<compile_context>
chip_gen: v5e
topology: v5e:2x2
jax: 0.10.0
libtpu: 0.0.40
codegen_flags: <defaults>
</compile_context>

<pallas_src>
import jax
import jax.numpy as jnp
from jax.experimental import pallas as pl
from jax.experimental.pallas import tpu as pltpu

_LANES = 128
_SUBLANES = 8


def _sigmoid_kernel(w_ref, o_ref):
    # Pure elementwise logistic: exp goes to the EUP, store on the VPU path.
    o_ref[...] = jax.nn.sigmoid(w_ref[...].astype(jnp.float32)).astype(o_ref.dtype)


def _round_up(x: int, m: int) -> int:
    return ((x + m - 1) // m) * m


def _vmem_capacity_bytes() -> int:
    """Physical per-core VMEM; conservative fallback if the query is unavailable."""
    try:
        return int(pltpu.get_tpu_info().vmem_capacity_bytes)
    except Exception:
        return 64 * 1024 * 1024  # v7x-sized (the smallest current generation)


def lift_forward(weight: jax.Array) -> jax.Array:
    """weight: (dim, 1) float32 — the PyTorch nn.Linear(1, dim) weight.

    Returns sigmoid(W @ ones(1)) == sigmoid(W[:, 0]) with shape (dim,).
    """
    dim = weight.shape[0]
    w_flat = weight.reshape(dim).astype(jnp.float32)

    # Generation-aware tile budget.
    vmem_phys = _vmem_capacity_bytes()
    small_vmem = vmem_phys <= 64 * 1024 * 1024          # v7x: 64 MiB physical
    tile_cap_bytes = (4 if small_vmem else 6) * 1024 * 1024
    budget_rows = max(
        _SUBLANES,
        (tile_cap_bytes // (_LANES * 4)) // _SUBLANES * _SUBLANES,
    )

    # Closed-form, lane/sublane-dense tiling (no trace-time divisor scan).
    rows0 = pl.cdiv(dim, _LANES)                        # rows before sublane padding
    num_tiles = pl.cdiv(rows0, budget_rows)             # 1 for any realistic `lift` dim
    tile_rows = _round_up(pl.cdiv(rows0, num_tiles), _SUBLANES)
    padded_rows = tile_rows * num_tiles
    padded_dim = padded_rows * _LANES

    if padded_dim != dim:
        w_flat = jnp.pad(w_flat, (0, padded_dim - dim))
    w2d = w_flat.reshape(padded_rows, _LANES)

    cost = pl.CostEstimate(
        flops=0,
        transcendentals=padded_dim,
        bytes_accessed=2 * padded_dim * 4,
    )

    if num_tiles == 1:
        # Whole array fits in one tile: single VMEM block, no grid, no
        # pipeline preamble, no per-step overhead.
        out = pl.pallas_call(
            _sigmoid_kernel,
            out_shape=jax.ShapeDtypeStruct((padded_rows, _LANES), jnp.float32),
            in_specs=[pl.BlockSpec(memory_space=pltpu.MemorySpace.VMEM)],
            out_specs=pl.BlockSpec(memory_space=pltpu.MemorySpace.VMEM),
            cost_estimate=cost,
        )(w2d)
    else:
        # Row-tiled, double-buffered pipeline for very large dims.  Cross-TC
        # sharding ("parallel") only when each core gets several large tiles.
        semantics = ("parallel",) if num_tiles >= 4 else ("arbitrary",)
        vmem_limit = (32 if small_vmem else 64) * 1024 * 1024
        out = pl.pallas_call(
            _sigmoid_kernel,
            out_shape=jax.ShapeDtypeStruct((padded_rows, _LANES), jnp.float32),
            grid=(num_tiles,),
            in_specs=[pl.BlockSpec((tile_rows, _LANES), lambda i: (i, 0))],
            out_specs=pl.BlockSpec((tile_rows, _LANES), lambda i: (i, 0)),
            compiler_params=pltpu.CompilerParams(
                dimension_semantics=semantics,
                vmem_limit_bytes=vmem_limit,
            ),
            cost_estimate=cost,
        )(w2d)

    return out.reshape(padded_dim)[:dim]


if __name__ == "__main__":
    # nn.Linear(1, dim, bias=False) init: uniform(-1/sqrt(in), 1/sqrt(in)),
    # in_features=1 -> bound 1.0.  Weight stored in PyTorch layout (dim, 1).
    key = jax.random.PRNGKey(0)

    # Small dim consistent with the module.
    dim = 32
    weight = jax.random.uniform(key, (dim, 1), dtype=jnp.float32,
                                minval=-1.0, maxval=1.0)
    out = lift_forward(weight)
    jax.block_until_ready(out)
    ref = jax.nn.sigmoid(weight.reshape(dim))
    assert out.shape == (dim,)
    assert jnp.allclose(out, ref, atol=1e-6, rtol=1e-6)

    # Non-multiple-of-128 dim exercises the padding + output-slice path.
    dim2 = 200
    weight2 = jax.random.uniform(jax.random.PRNGKey(1), (dim2, 1),
                                 dtype=jnp.float32, minval=-1.0, maxval=1.0)
    out2 = lift_forward(weight2)
    jax.block_until_ready(out2)
    ref2 = jax.nn.sigmoid(weight2.reshape(dim2))
    assert out2.shape == (dim2,)
    assert jnp.allclose(out2, ref2, atol=1e-6, rtol=1e-6)

    # Larger dim now takes the single-block (no-grid) path instead of a
    # 2-step pipelined grid.
    dim3 = 4096
    weight3 = jax.random.uniform(jax.random.PRNGKey(2), (dim3, 1),
                                 dtype=jnp.float32, minval=-1.0, maxval=1.0)
    out3 = lift_forward(weight3)
    jax.block_until_ready(out3)
    ref3 = jax.nn.sigmoid(weight3.reshape(dim3))
    assert out3.shape == (dim3,)
    assert jnp.allclose(out3, ref3, atol=1e-6, rtol=1e-6)

    print("KERNEL_OK")
</pallas_src>

<mosaic_0001>
module attributes {stable_mosaic.version = 11 : i64} {
  func.func @_sigmoid_kernel(%arg0: memref<8x128xf32, #tpu.memory_space<vmem>>, %arg1: memref<8x128xf32, #tpu.memory_space<vmem>>) attributes {dimension_semantics = [], scalar_prefetch = 0 : i64, scratch_operands = 0 : i64, tpu.core_type = #tpu.core_type<tc>} {
    %c0 = arith.constant 0 : index
    %c0_0 = arith.constant 0 : index
    %0 = vector.load %arg0[%c0, %c0_0] : memref<8x128xf32, #tpu.memory_space<vmem>>, vector<8x128xf32>
    %1 = arith.negf %0 : vector<8x128xf32>
    %2 = math.exp %1 : vector<8x128xf32>
    %cst = arith.constant 1.000000e+00 : f32
    %3 = vector.broadcast %cst : f32 to vector<8x128xf32>
    %4 = arith.addf %3, %2 : vector<8x128xf32>
    %5 = arith.divf %3, %4 : vector<8x128xf32>
    %c0_1 = arith.constant 0 : index
    %c0_2 = arith.constant 0 : index
    %6 = vector.load %arg1[%c0_1, %c0_2] : memref<8x128xf32, #tpu.memory_space<vmem>>, vector<8x128xf32>
    tpu.vector_store %arg1[%c0_1, %c0_2], %5 {strides = array<i32>} : memref<8x128xf32, #tpu.memory_space<vmem>>, vector<8x128xf32>,
    return
  }
}

</mosaic_0001>

<llo_original>
// kernel: tpu_custom_call.1
$region0: #{tpu_custom_call.1}
  #allocation0 [shape = 'u32[]', space=smem, size = 0x4, offset = 0x4, fixed_abs, tag = 'smem constant byte address 0x4 - core index']
  #allocation1 [shape = 'u32[72,128]{1,0:T(1,128)}', space=vmem, size = 0x9000, scoped, tag = 'internal scratch']
  %s0 = inlined_call_operand.hbm [shape: f32[8,128], index: 0, kind: input, shape index: {}]
  %s1 = inlined_call_operand.hbm [shape: f32[8,128], index: 1, kind: output, shape index: {}]
  %s2 = sld [smem:[#allocation0]]
  $region18: #{tpu_custom_call.1} parent=0
    _
  %s4 = ssub.s32 1, %s2
  %s5 = scalar_select 0, %s4, %s2
  $region1: #{tpu_custom_call.1} parent=0
    #allocation2 [shape = 'u8[4096]{0}', space=vmem, size = 0x1000, scoped, tag = 'input window, operand 0, single buffered']
    #allocation3 [shape = 's32[1]{0}', space=sflag, size = 0x4, scoped, tag = 'scoped memory for tpu_custom_call.1']
    #allocation4 [shape = 's32[1]{0}', space=sflag, size = 0x4, scoped, tag = 'scoped memory for tpu_custom_call.1']
    #allocation5 [shape = 'u8[4096]{0}', space=vmem, size = 0x1000, scoped, tag = 'output window, operand 0, single buffered']
    %6 = vsyncpa [#allocation3], 0
    %7 = vsyncpa [#allocation4], 0
    // Predicated region
    $region2: #{tpu_custom_call.1} parent=1 // pred_check
      _
    $region3: #{tpu_custom_call.1} parent=1 // pred_check_branch
      %9 = sbr.rel (0) target = $region5
    $region4: #{tpu_custom_call.1} parent=1 // pred_region
      %11 = vsyncadd [#allocation3], 0
      %s13 = sshll.u32 %s0, 4
      %s14 = int_to_ptr.hbm [resolvable:$true] %s13
      %s15 = sshll.u32 [#allocation2], 4
      %s16 = int_to_ptr.vmem [resolvable:$true] %s15
      %18 = dma.hbm_to_vmem [thread:$0]  %s14, 128, %s16, [#allocation3]
    $region5: #{tpu_custom_call.1} parent=1 // pred_fallthru
      _
    // Predicated region
    $region6: #{tpu_custom_call.1} parent=1 // pred_check
      _
    $region7: #{tpu_custom_call.1} parent=1 // pred_check_branch
      %20 = sbr.rel (0) target = $region9
    $region8: #{tpu_custom_call.1} parent=1 // pred_region
      %22 = dma.done [#allocation3], 128
    $region9: #{tpu_custom_call.1} parent=1 // pred_fallthru
      _
    %v23 = vld [vmem:[#allocation2] sm:$0xff]
    %v24 = vxor.u32 %v23, 2147483648
    %v25 = vmul.f32 %v24, 1.442695
    %v26 = vpow.pop %v25
    %v27 = vadd.f32 %v26, 1.0
    %v28 = vrcp.pop %v27
    %v29 = vmul.f32 %v27, %v28
    %v30 = vsub.f32 1.0, %v29
    %v31 = vmul.f32 %v28, %v30
    %v32 = vadd.f32 %v28, %v31
    %vm33 = vweird.f32 %v27
    %vm34 = vweird.f32 %v28
    %vm35 = vmor %vm33, %vm34
    %v36 = vsel %vm35, %v28, %v32
    %v37 = vand.u32 2147483647, %v27
    %vm38 = vcmp.eq.f32.partialorder %v37, 8.507059e+37
    %v39 = vand.u32 %v27, 2147483648
    %v40 = vor.u32 1.1754944e-38, %v39
    %v41 = vsel %vm38, %v40, %v36
    %v42 = vmul.f32 1.0, %v41
    %43 = vst [vmem:[#allocation5] sm:$0xff] %v42
    // Predicated region
    $region10: #{tpu_custom_call.1} parent=1 // pred_check
      _
    $region11: #{tpu_custom_call.1} parent=1 // pred_check_branch
      %45 = sbr.rel (0) target = $region13
    $region12: #{tpu_custom_call.1} parent=1 // pred_region
      %47 = vsyncadd [#allocation4], 0
      %s49 = sshll.u32 [#allocation5], 4
      %s50 = int_to_ptr.vmem [resolvable:$true] %s49
      %s51 = sshll.u32 %s1, 4
      %s52 = int_to_ptr.hbm [resolvable:$true] %s51
      %54 = dma.vmem_to_hbm [thread:$0]  %s50, 128, %s52, [#allocation4]
    $region13: #{tpu_custom_call.1} parent=1 // pred_fallthru
      _
    // Predicated region
    $region14: #{tpu_custom_call.1} parent=1 // pred_check
      _
    $region15: #{tpu_custom_call.1} parent=1 // pred_check_branch
      %56 = sbr.rel (0) target = $region17
    $region16: #{tpu_custom_call.1} parent=1 // pred_region
      %58 = dma.done [#allocation4], 128
    $region17: #{tpu_custom_call.1} parent=1 // pred_fallthru
      _
    %59 = vsyncpa [#allocation3], 1
    %60 = vsyncpa [#allocation4], 1

</llo_original>
